<compile_context>
chip_gen: v7x
topology: tpu7x:2x2x1
jax: 0.10.0
libtpu: 0.0.40
codegen_flags: <defaults>
</compile_context>

<pallas_src>
import functools

import jax
import jax.numpy as jnp
from jax.experimental import pallas as pl
from jax.experimental.pallas import tpu as pltpu

INPUT_SIZE = 28 * 28        # 784
HIDDEN_SIZE = 128
LATENT_SIZE = 8
OUTPUT_SIZE = 28 * 28       # 784


def _round_up(x, m):
    return ((x + m - 1) // m) * m


def _ae_kernel(x_ref, w1_ref, b1_ref, w23_ref, b23_ref, w4_ref, b4_ref, out_ref):
    cdt = w1_ref.dtype                                   # compute (operand) dtype

    # In-kernel cast (VPU slot has slack; avoids a wrapper-side materialized copy).
    x = x_ref[...].astype(cdt)                           # (TB, 784)

    # Encoder layer 1: 784 -> 128, f32 accumulation, bias+relu in f32.
    h1 = jnp.dot(x, w1_ref[...], preferred_element_type=jnp.float32)
    h1 = jnp.maximum(h1 + b1_ref[...], 0.0)              # (TB, 128) f32

    # Folded latent path (enc.linear2 ∘ dec.linear1): 128 -> 128 (exact; z has
    # no activation so the fold is mathematically identical).
    h2 = jnp.dot(h1.astype(cdt), w23_ref[...], preferred_element_type=jnp.float32)
    h2 = jnp.maximum(h2 + b23_ref[...], 0.0)             # (TB, 128) f32

    # Decoder layer 2: 128 -> 784, bias + sigmoid in f32 (v5e-safe epilogue).
    y = jnp.dot(h2.astype(cdt), w4_ref[...], preferred_element_type=jnp.float32)
    y = jax.nn.sigmoid(y + b4_ref[...])                  # (TB, 784) f32

    out_ref[...] = y.astype(out_ref.dtype)


def prepare_params(params, use_bf16=True):
    """One-time prep: fold the latent layers and cast weights for the MXU.

    Done outside the per-call forward so no per-call XLA work remains.
    """
    w1, b1, w2, b2, w3, b3, w4, b4 = params
    w23 = w2 @ w3                     # (128, 128)
    b23 = b2 @ w3 + b3                # (1, 128)
    cdt = jnp.bfloat16 if use_bf16 else jnp.float32
    return (w1.astype(cdt), b1.astype(jnp.float32),
            w23.astype(cdt), b23.astype(jnp.float32),
            w4.astype(cdt), b4.astype(jnp.float32))


@functools.partial(jax.jit, static_argnames=("batch_tile",))
def ae_forward(x, prepared, batch_tile=512):
    B, F = x.shape
    assert F == INPUT_SIZE
    w1, b1, w23, b23, w4, b4 = prepared

    # Batch tile: multiple of 8, capped at ceil(B/2) (rounded up to 8) so the
    # grid has >= 2 steps whenever possible -> v7x megacore sharding; default
    # 512 amortizes the ~0.35 us per-step overhead on v6e/v7x. No batch
    # padding: Pallas masks the partial last block (OOB writes are dropped).
    tile_b = min(batch_tile, max(8, _round_up(pl.cdiv(B, 2), 8)))
    tile_b = _round_up(tile_b, 8)
    grid = (pl.cdiv(B, tile_b),)

    full = lambda arr: pl.BlockSpec(arr.shape, lambda i: (0, 0))

    w_itemsize = jnp.dtype(w1.dtype).itemsize
    weight_bytes = (w1.size + w23.size + w4.size) * w_itemsize + \
                   (b1.size + b23.size + b4.size) * 4
    cost = pl.CostEstimate(
        flops=2 * B * (INPUT_SIZE * HIDDEN_SIZE
                       + HIDDEN_SIZE * HIDDEN_SIZE
                       + HIDDEN_SIZE * OUTPUT_SIZE),
        transcendentals=2 * B * OUTPUT_SIZE,             # sigmoid = exp + recip
        bytes_accessed=B * INPUT_SIZE * 4                # x in (f32)
                       + B * OUTPUT_SIZE * 4             # y out (f32)
                       + weight_bytes,
    )

    out = pl.pallas_call(
        _ae_kernel,
        out_shape=jax.ShapeDtypeStruct((B, OUTPUT_SIZE), jnp.float32),
        grid_spec=pltpu.PrefetchScalarGridSpec(
            num_scalar_prefetch=0,
            grid=grid,
            in_specs=[
                pl.BlockSpec((tile_b, INPUT_SIZE), lambda i: (i, 0)),  # x tile
                full(w1), full(b1),
                full(w23), full(b23),
                full(w4), full(b4),
            ],
            out_specs=pl.BlockSpec((tile_b, OUTPUT_SIZE), lambda i: (i, 0)),
        ),
        compiler_params=pltpu.CompilerParams(
            dimension_semantics=("parallel",),            # megacore-shardable
        ),
        cost_estimate=cost,
    )(x, w1, b1, w23, b23, w4, b4)

    return out


def init_params(key):
    """Deterministic init mimicking torch.nn.Linear default (U[-1/sqrt(fan_in), +])."""
    def linear(key, fan_in, fan_out):
        kw, kb = jax.random.split(key)
        bound = 1.0 / jnp.sqrt(float(fan_in))
        w = jax.random.uniform(kw, (fan_in, fan_out), jnp.float32, -bound, bound)
        b = jax.random.uniform(kb, (1, fan_out), jnp.float32, -bound, bound)
        return w, b

    k1, k2, k3, k4 = jax.random.split(key, 4)
    w1, b1 = linear(k1, INPUT_SIZE, HIDDEN_SIZE)    # encoder.linear1
    w2, b2 = linear(k2, HIDDEN_SIZE, LATENT_SIZE)   # encoder.linear2
    w3, b3 = linear(k3, LATENT_SIZE, HIDDEN_SIZE)   # decoder.linear1
    w4, b4 = linear(k4, HIDDEN_SIZE, OUTPUT_SIZE)   # decoder.linear2
    return (w1, b1, w2, b2, w3, b3, w4, b4)


def ae_forward_ref(x, params):
    """Pure-JAX reference (mirrors the PyTorch forward exactly, f32)."""
    w1, b1, w2, b2, w3, b3, w4, b4 = params
    h1 = jax.nn.relu(x @ w1 + b1)
    z = h1 @ w2 + b2
    h2 = jax.nn.relu(z @ w3 + b3)
    return jax.nn.sigmoid(h2 @ w4 + b4)


if __name__ == "__main__":
    key = jax.random.PRNGKey(0)
    kp, kx = jax.random.split(key)

    params = init_params(kp)
    batch = 12   # deliberately NOT a multiple of 8 -> exercises partial-block masking
    x = jax.random.uniform(kx, (batch, INPUT_SIZE), jnp.float32)  # MNIST-like [0,1)

    ref = ae_forward_ref(x, params)

    # f32 operand path: only fp-rounding differences from the latent fold.
    prep_f32 = prepare_params(params, use_bf16=False)
    out_f32 = jax.block_until_ready(ae_forward(x, prep_f32))
    assert out_f32.shape == (batch, OUTPUT_SIZE), out_f32.shape
    assert jnp.allclose(out_f32, ref, atol=1e-4, rtol=1e-4), "f32 mismatch vs JAX reference"

    # bf16 operand path (default / fast): looser tolerance, f32 accumulation.
    prep_bf16 = prepare_params(params, use_bf16=True)
    out_bf16 = jax.block_until_ready(ae_forward(x, prep_bf16))
    assert out_bf16.shape == (batch, OUTPUT_SIZE), out_bf16.shape
    assert jnp.allclose(out_bf16, ref, atol=2e-2, rtol=2e-2), "bf16 mismatch vs JAX reference"

    print("KERNEL_OK")
</pallas_src>

<mosaic_0001>
module attributes {stable_mosaic.version = 11 : i64} {
  func.func @_ae_kernel(%arg0: i32, %arg1: memref<8x784xf32, #tpu.memory_space<vmem>>, %arg2: memref<784x128xf32, #tpu.memory_space<vmem>>, %arg3: memref<1x128xf32, #tpu.memory_space<vmem>>, %arg4: memref<128x128xf32, #tpu.memory_space<vmem>>, %arg5: memref<1x128xf32, #tpu.memory_space<vmem>>, %arg6: memref<128x784xf32, #tpu.memory_space<vmem>>, %arg7: memref<1x784xf32, #tpu.memory_space<vmem>>, %arg8: memref<8x784xf32, #tpu.memory_space<vmem>>) attributes {dimension_semantics = [#tpu.dimension_semantics<parallel>], iteration_bounds = array<i64: 2>, scalar_prefetch = 0 : i64, scratch_operands = 0 : i64, tpu.core_type = #tpu.core_type<tc>, window_params = [{transform_indices = @transform_0, window_bounds = array<i64: 8, 784>}, {pipeline_mode = #tpu.pipeline_mode<synchronous>, transform_indices = @transform_1, window_bounds = array<i64: 784, 128>}, {pipeline_mode = #tpu.pipeline_mode<synchronous>, transform_indices = @transform_2, window_bounds = array<i64: 1, 128>}, {pipeline_mode = #tpu.pipeline_mode<synchronous>, transform_indices = @transform_3, window_bounds = array<i64: 128, 128>}, {pipeline_mode = #tpu.pipeline_mode<synchronous>, transform_indices = @transform_4, window_bounds = array<i64: 1, 128>}, {pipeline_mode = #tpu.pipeline_mode<synchronous>, transform_indices = @transform_5, window_bounds = array<i64: 128, 784>}, {pipeline_mode = #tpu.pipeline_mode<synchronous>, transform_indices = @transform_6, window_bounds = array<i64: 1, 784>}, {transform_indices = @transform_7, window_bounds = array<i64: 8, 784>}]} {
    %c0 = arith.constant 0 : index
    %c0_0 = arith.constant 0 : index
    %0 = vector.load %arg1[%c0, %c0_0] : memref<8x784xf32, #tpu.memory_space<vmem>>, vector<8x784xf32>
    %c0_1 = arith.constant 0 : index
    %c0_2 = arith.constant 0 : index
    %1 = vector.load %arg2[%c0_1, %c0_2] : memref<784x128xf32, #tpu.memory_space<vmem>>, vector<784x128xf32>
    %cst = arith.constant dense<0.000000e+00> : vector<8x128xf32>
    %2 = tpu.matmul %0, %1, %cst {dimension_numbers = #tpu.dot_dimension_numbers<[1], [0], [0], [1], [0, 0, 1, 1], [], []>} : vector<8x784xf32>, vector<784x128xf32>, vector<8x128xf32> -> vector<8x128xf32>
    %c0_3 = arith.constant 0 : index
    %c0_4 = arith.constant 0 : index
    %3 = vector.load %arg3[%c0_3, %c0_4] : memref<1x128xf32, #tpu.memory_space<vmem>>, vector<1x128xf32>
    %4 = vector.broadcast %3 : vector<1x128xf32> to vector<8x128xf32>
    %5 = arith.addf %2, %4 : vector<8x128xf32>
    %cst_5 = arith.constant 0.000000e+00 : f32
    %6 = vector.broadcast %cst_5 : f32 to vector<8x128xf32>
    %7 = arith.maximumf %5, %6 : vector<8x128xf32>
    %c0_6 = arith.constant 0 : index
    %c0_7 = arith.constant 0 : index
    %8 = vector.load %arg4[%c0_6, %c0_7] : memref<128x128xf32, #tpu.memory_space<vmem>>, vector<128x128xf32>
    %cst_8 = arith.constant dense<0.000000e+00> : vector<8x128xf32>
    %9 = tpu.matmul %7, %8, %cst_8 {dimension_numbers = #tpu.dot_dimension_numbers<[1], [0], [0], [1], [0, 0, 1, 1], [], []>} : vector<8x128xf32>, vector<128x128xf32>, vector<8x128xf32> -> vector<8x128xf32>
    %c0_9 = arith.constant 0 : index
    %c0_10 = arith.constant 0 : index
    %10 = vector.load %arg5[%c0_9, %c0_10] : memref<1x128xf32, #tpu.memory_space<vmem>>, vector<1x128xf32>
    %11 = vector.broadcast %10 : vector<1x128xf32> to vector<8x128xf32>
    %12 = arith.addf %9, %11 : vector<8x128xf32>
    %cst_11 = arith.constant 0.000000e+00 : f32
    %13 = vector.broadcast %cst_11 : f32 to vector<8x128xf32>
    %14 = arith.maximumf %12, %13 : vector<8x128xf32>
    %c0_12 = arith.constant 0 : index
    %c0_13 = arith.constant 0 : index
    %15 = vector.load %arg6[%c0_12, %c0_13] : memref<128x784xf32, #tpu.memory_space<vmem>>, vector<128x784xf32>
    %cst_14 = arith.constant dense<0.000000e+00> : vector<8x784xf32>
    %16 = tpu.matmul %14, %15, %cst_14 {dimension_numbers = #tpu.dot_dimension_numbers<[1], [0], [0], [1], [0, 0, 1, 1], [], []>} : vector<8x128xf32>, vector<128x784xf32>, vector<8x784xf32> -> vector<8x784xf32>
    %c0_15 = arith.constant 0 : index
    %c0_16 = arith.constant 0 : index
    %17 = vector.load %arg7[%c0_15, %c0_16] : memref<1x784xf32, #tpu.memory_space<vmem>>, vector<1x784xf32>
    %18 = vector.broadcast %17 : vector<1x784xf32> to vector<8x784xf32>
    %19 = arith.addf %16, %18 : vector<8x784xf32>
    %20 = arith.negf %19 : vector<8x784xf32>
    %21 = math.exp %20 : vector<8x784xf32>
    %cst_17 = arith.constant 1.000000e+00 : f32
    %22 = vector.broadcast %cst_17 : f32 to vector<8x784xf32>
    %23 = arith.addf %22, %21 : vector<8x784xf32>
    %24 = arith.divf %22, %23 : vector<8x784xf32>
    %c0_18 = arith.constant 0 : index
    %c0_19 = arith.constant 0 : index
    %25 = vector.load %arg8[%c0_18, %c0_19] : memref<8x784xf32, #tpu.memory_space<vmem>>, vector<8x784xf32>
    tpu.vector_store %arg8[%c0_18, %c0_19], %24 {strides = array<i32>} : memref<8x784xf32, #tpu.memory_space<vmem>>, vector<8x784xf32>,
    return
  }
  func.func @transform_0(%arg0: i32) -> (i32, i32) {
    %c0_i32 = arith.constant 0 : i32
    %c0_i32_0 = arith.constant 0 : i32
    return %arg0, %c0_i32 : i32, i32
  }
  func.func @transform_1(%arg0: i32) -> (i32, i32) {
    %c0_i32 = arith.constant 0 : i32
    %c0_i32_0 = arith.constant 0 : i32
    %c0_i32_1 = arith.constant 0 : i32
    return %c0_i32, %c0_i32_0 : i32, i32
  }
  func.func @transform_2(%arg0: i32) -> (i32, i32) {
    %c0_i32 = arith.constant 0 : i32
    %c0_i32_0 = arith.constant 0 : i32
    %c0_i32_1 = arith.constant 0 : i32
    return %c0_i32, %c0_i32_0 : i32, i32
  }
  func.func @transform_3(%arg0: i32) -> (i32, i32) {
    %c0_i32 = arith.constant 0 : i32
    %c0_i32_0 = arith.constant 0 : i32
    %c0_i32_1 = arith.constant 0 : i32
    return %c0_i32, %c0_i32_0 : i32, i32
  }
  func.func @transform_4(%arg0: i32) -> (i32, i32) {
    %c0_i32 = arith.constant 0 : i32
    %c0_i32_0 = arith.constant 0 : i32
    %c0_i32_1 = arith.constant 0 : i32
    return %c0_i32, %c0_i32_0 : i32, i32
  }
  func.func @transform_5(%arg0: i32) -> (i32, i32) {
    %c0_i32 = arith.constant 0 : i32
    %c0_i32_0 = arith.constant 0 : i32
    %c0_i32_1 = arith.constant 0 : i32
    return %c0_i32, %c0_i32_0 : i32, i32
  }
  func.func @transform_6(%arg0: i32) -> (i32, i32) {
    %c0_i32 = arith.constant 0 : i32
    %c0_i32_0 = arith.constant 0 : i32
    %c0_i32_1 = arith.constant 0 : i32
    return %c0_i32, %c0_i32_0 : i32, i32
  }
  func.func @transform_7(%arg0: i32) -> (i32, i32) {
    %c0_i32 = arith.constant 0 : i32
    %c0_i32_0 = arith.constant 0 : i32
    return %arg0, %c0_i32 : i32, i32
  }
}

</mosaic_0001>

<llo_original>
// kernel: ae_forward.1
$region0: #{ae_forward.1}
  #allocation0 [shape = 'u32[]', space=smem, size = 0x4, offset = 0x4, fixed_abs, tag = 'smem constant byte address 0x4 - core index']
  #allocation1 [shape = 'u32[144,128]{1,0:T(1,128)}', space=vmem, size = 0x12000, scoped, tag = 'internal scratch']
  %s0 = inlined_call_operand.vmem [shape: f32[12,784], index: 0, kind: input, shape index: {}]
  %s1 = inlined_call_operand.vmem [shape: f32[784,128], index: 1, kind: input, shape index: {}]
  %s2 = inlined_call_operand.vmem [shape: f32[1,128], index: 2, kind: input, shape index: {}]
  %s3 = inlined_call_operand.vmem [shape: f32[128,128], index: 3, kind: input, shape index: {}]
  %s4 = inlined_call_operand.vmem [shape: f32[1,128], index: 4, kind: input, shape index: {}]
  %s5 = inlined_call_operand.vmem [shape: f32[128,784], index: 5, kind: input, shape index: {}]
  %s6 = inlined_call_operand.vmem [shape: f32[1,784], index: 6, kind: input, shape index: {}]
  %s7 = inlined_call_operand.hbm [shape: f32[12,784], index: 7, kind: output, shape index: {}]
  %s8 = sld [smem:[#allocation0]]
  $region61: #{ae_forward.1} parent=0
    _
  %s10 = ssub.s32 1, %s8
  %s11 = scalar_select 0, %s10, %s8
  $region1: #{ae_forward.1} parent=0
    #allocation2 [shape = 'u8[57344]{0}', space=vmem, size = 0xe000, scoped, tag = 'output window, operand 0']
    #allocation3 [shape = 's32[2]{0}', space=sflag, size = 0x8, scoped, tag = 'scoped memory for ae_forward.1']
    %12 = vsyncpa [#allocation3], 0
    %s13 = scalar_lea.sflag [#allocation3], 1
    %14 = vsyncpa %s13, 0
    loop: start=0, step=1, limit=4
    $region2: #{ae_forward.1} parent=1 // loop_pre_header
      _
    $region3: #{ae_forward.1} parent=1 // loop_header
      %s16 = sphi 0, %s20
      %p17 = scmp.ge.s32.totalorder %s16, 4
      %s26 = sphi 0, %s28
      %s29 = sphi 0, %s26
      %s30 = sphi 0, %s29
      %s46 = sphi 0, %s30
      %s50 = sphi 0, %s50
      %s52 = sphi 0, %s50
      %s53 = sphi 0, %s52
      %s67 = sphi 0, %s53
      %s71 = sphi 0, %s71
      %s73 = sphi 0, %s71
      %s74 = sphi 0, %s73
      %s88 = sphi 0, %s74
      %s92 = sphi 0, %s92
      %s94 = sphi 0, %s92
      %s95 = sphi 0, %s94
      %s109 = sphi 0, %s95
      %s113 = sphi 0, %s113
      %s115 = sphi 0, %s113
      %s116 = sphi 0, %s115
      %s130 = sphi 0, %s116
      %s134 = sphi 0, %s134
      %s136 = sphi 0, %s134
      %s137 = sphi 0, %s136
      %s151 = sphi 0, %s137
      %s155 = sphi 0, %s155
      %s157 = sphi 0, %s155
      %s158 = sphi 0, %s157
      %s172 = sphi 0, %s158
      %s178 = sphi 0, %s180
      %s181 = sphi 0, %s178
      %s182 = sphi 0, %s181
      %s198 = sphi 0, %s182
    $region4: #{ae_forward.1} parent=1 // loop_header_branch
      %19 = sbr.rel (%p17) target = $region8
    $region5: #{ae_forward.1} parent=1 // loop_body
      %s21 = ssub.s32 %s16, 1
      %s22 = ssub.s32 %s16, 2
      %s23 = sadd.s32 %s16, 1
      %s24 = ssub.s32 %s16, %s23
      %p25 = scmp.eq.s32.totalorder %s24, 0
      %s27 = sadd.s32 %s26, 1
      %s28 = scalar_select %p25, %s26, %s27
      %p31 = pneg %p25
      %p32 = scmp.eq.s32.totalorder %s16, 1
      %p33 = por %p31, %p32
      %p34 = scmp.ne.s32.totalorder %s26, %s29
      %p35 = scmp.eq.s32.totalorder %s16, 0
      %p36 = por %p34, %p35
      %p37 = scmp.ne.s32.totalorder %s26, %s29
      %p38 = scmp.eq.s32.totalorder %s21, 1
      %p39 = por %p37, %p38
      %p40 = scmp.ne.s32.totalorder %s29, %s30
      %p41 = scmp.eq.s32.totalorder %s21, 0
      %p42 = por %p40, %p41
      %p43 = scmp.ne.s32.totalorder %s29, %s30
      %p44 = scmp.eq.s32.totalorder %s22, 1
      %p45 = por %p43, %p44
      %p47 = scmp.ne.s32.totalorder %s30, %s46
      %p48 = scmp.eq.s32.totalorder %s22, 0
      %p49 = por %p47, %p48
      %s51 = sadd.s32 %s50, 1
      %p54 = scmp.eq.s32.totalorder %s16, 1
      %p55 = scmp.ne.s32.totalorder %s50, %s52
      %p56 = scmp.eq.s32.totalorder %s16, 0
      %p57 = por %p55, %p56
      %p58 = scmp.ne.s32.totalorder %s50, %s52
      %p59 = scmp.eq.s32.totalorder %s21, 1
      %p60 = por %p58, %p59
      %p61 = scmp.ne.s32.totalorder %s52, %s53
      %p62 = scmp.eq.s32.totalorder %s21, 0
      %p63 = por %p61, %p62
      %p64 = scmp.ne.s32.totalorder %s52, %s53
      %p65 = scmp.eq.s32.totalorder %s22, 1
      %p66 = por %p64, %p65
      %p68 = scmp.ne.s32.totalorder %s53, %s67
      %p69 = scmp.eq.s32.totalorder %s22, 0
      %p70 = por %p68, %p69
      %s72 = sadd.s32 %s71, 1
      %p75 = scmp.eq.s32.totalorder %s16, 1
      %p76 = scmp.ne.s32.totalorder %s71, %s73
      %p77 = scmp.eq.s32.totalorder %s16, 0
      %p78 = por %p76, %p77
      %p79 = scmp.ne.s32.totalorder %s71, %s73
      %p80 = scmp.eq.s32.totalorder %s21, 1
      %p81 = por %p79, %p80
      %p82 = scmp.ne.s32.totalorder %s73, %s74
      %p83 = scmp.eq.s32.totalorder %s21, 0
      %p84 = por %p82, %p83
      %p85 = scmp.ne.s32.totalorder %s73, %s74
      %p86 = scmp.eq.s32.totalorder %s22, 1
      %p87 = por %p85, %p86
      %p89 = scmp.ne.s32.totalorder %s74, %s88
      %p90 = scmp.eq.s32.totalorder %s22, 0
      %p91 = por %p89, %p90
      %s93 = sadd.s32 %s92, 1
      %p96 = scmp.eq.s32.totalorder %s16, 1
      %p97 = scmp.ne.s32.totalorder %s92, %s94
      %p98 = scmp.eq.s32.totalorder %s16, 0
      %p99 = por %p97, %p98
      %p100 = scmp.ne.s32.totalorder %s92, %s94
      %p101 = scmp.eq.s32.totalorder %s21, 1
      %p102 = por %p100, %p101
      %p103 = scmp.ne.s32.totalorder %s94, %s95
      %p104 = scmp.eq.s32.totalorder %s21, 0
      %p105 = por %p103, %p104
      %p106 = scmp.ne.s32.totalorder %s94, %s95
      %p107 = scmp.eq.s32.totalorder %s22, 1
      %p108 = por %p106, %p107
      %p110 = scmp.ne.s32.totalorder %s95, %s109
      %p111 = scmp.eq.s32.totalorder %s22, 0
      %p112 = por %p110, %p111
      %s114 = sadd.s32 %s113, 1
      %p117 = scmp.eq.s32.totalorder %s16, 1
      %p118 = scmp.ne.s32.totalorder %s113, %s115
      %p119 = scmp.eq.s32.totalorder %s16, 0
      %p120 = por %p118, %p119
      %p121 = scmp.ne.s32.totalorder %s113, %s115
      %p122 = scmp.eq.s32.totalorder %s21, 1
      %p123 = por %p121, %p122
      %p124 = scmp.ne.s32.totalorder %s115, %s116
      %p125 = scmp.eq.s32.totalorder %s21, 0
      %p126 = por %p124, %p125
      %p127 = scmp.ne.s32.totalorder %s115, %s116
      %p128 = scmp.eq.s32.totalorder %s22, 1
      %p129 = por %p127, %p128
      %p131 = scmp.ne.s32.totalorder %s116, %s130
      %p132 = scmp.eq.s32.totalorder %s22, 0
      %p133 = por %p131, %p132
      %s135 = sadd.s32 %s134, 1
      %p138 = scmp.eq.s32.totalorder %s16, 1
      %p139 = scmp.ne.s32.totalorder %s134, %s136
      %p140 = scmp.eq.s32.totalorder %s16, 0
      %p141 = por %p139, %p140
      %p142 = scmp.ne.s32.totalorder %s134, %s136
      %p143 = scmp.eq.s32.totalorder %s21, 1
      %p144 = por %p142, %p143
      %p145 = scmp.ne.s32.totalorder %s136, %s137
      %p146 = scmp.eq.s32.totalorder %s21, 0
      %p147 = por %p145, %p146
      %p148 = scmp.ne.s32.totalorder %s136, %s137
      %p149 = scmp.eq.s32.totalorder %s22, 1
      %p150 = por %p148, %p149
      %p152 = scmp.ne.s32.totalorder %s137, %s151
      %p153 = scmp.eq.s32.totalorder %s22, 0
      %p154 = por %p152, %p153
      %s156 = sadd.s32 %s155, 1
      %p159 = scmp.eq.s32.totalorder %s16, 1
      %p160 = scmp.ne.s32.totalorder %s155, %s157
      %p161 = scmp.eq.s32.totalorder %s16, 0
      %p162 = por %p160, %p161
      %p163 = scmp.ne.s32.totalorder %s155, %s157
      %p164 = scmp.eq.s32.totalorder %s21, 1
      %p165 = por %p163, %p164
      %p166 = scmp.ne.s32.totalorder %s157, %s158
      %p167 = scmp.eq.s32.totalorder %s21, 0
      %p168 = por %p166, %p167
      %p169 = scmp.ne.s32.totalorder %s157, %s158
      %p170 = scmp.eq.s32.totalorder %s22, 1
      %p171 = por %p169, %p170
      %p173 = scmp.ne.s32.totalorder %s158, %s172
      %p174 = scmp.eq.s32.totalorder %s22, 0
      %p175 = por %p173, %p174
      %s176 = ssub.s32 %s16, %s23
      %p177 = scmp.eq.s32.totalorder %s176, 0
      %s179 = sadd.s32 %s178, 1
      %s180 = scalar_select %p177, %s178, %s179
      %p183 = pneg %p177
      %p184 = scmp.eq.s32.totalorder %s16, 1
      %p185 = por %p183, %p184
      %p186 = scmp.ne.s32.totalorder %s178, %s181
      %p187 = scmp.eq.s32.totalorder %s16, 0
      %p188 = por %p186, %p187
      %p189 = scmp.ne.s32.totalorder %s178, %s181
      %p190 = scmp.eq.s32.totalorder %s21, 1
      %p191 = por %p189, %p190
      %p192 = scmp.ne.s32.totalorder %s181, %s182
      %p193 = scmp.eq.s32.totalorder %s21, 0
      %p194 = por %p192, %p193
      %p195 = scmp.ne.s32.totalorder %s181, %s182
      %p196 = scmp.eq.s32.totalorder %s22, 1
      %p197 = por %p195, %p196
      %p199 = scmp.ne.s32.totalorder %s182, %s198
      %p200 = scmp.eq.s32.totalorder %s22, 0
      %p201 = por %p199, %p200
      %p202 = scmp.le.s32.totalorder 1, %s16
      %p203 = scmp.lt.s32.totalorder %s16, 3
      %p204 = pnand %p202, %p203
      %p205 = pneg %p204
      // Predicated region
      $region9: #{ae_forward.1} parent=5 // pred_check
        _
      $region10: #{ae_forward.1} parent=5 // pred_check_branch
        %207 = sbr.rel (%p204) target = $region12
      $region11: #{ae_forward.1} parent=5 // pred_region
        %s208 = ssub.s32 %s16, 1
        // Predicated region
        $region13: #{ae_forward.1} parent=11 // pred_check
          %p209 = pneg %p63
        $region14: #{ae_forward.1} parent=11 // pred_check_branch
          %211 = sbr.rel (%p209) target = $region16
        $region15: #{ae_forward.1} parent=11 // pred_region
          _
        $region16: #{ae_forward.1} parent=11 // pred_fallthru
          _
        // Predicated region
        $region17: #{ae_forward.1} parent=11 // pred_check
          %p212 = pneg %p84
        $region18: #{ae_forward.1} parent=11 // pred_check_branch
          %214 = sbr.rel (%p212) target = $region20
        $region19: #{ae_forward.1} parent=11 // pred_region
          _
        $region20: #{ae_forward.1} parent=11 // pred_fallthru
          _
        // Predicated region
        $region21: #{ae_forward.1} parent=11 // pred_check
          %p215 = pneg %p105
        $region22: #{ae_forward.1} parent=11 // pred_check_branch
          %217 = sbr.rel (%p215) target = $region24
        $region23: #{ae_forward.1} parent=11 // pred_region
          _
        $region24: #{ae_forward.1} parent=11 // pred_fallthru
          _
        // Predicated region
        $region25: #{ae_forward.1} parent=11 // pred_check
          %p218 = pneg %p126
        $region26: #{ae_forward.1} parent=11 // pred_check_branch
          %220 = sbr.rel (%p218) target = $region28
        $region27: #{ae_forward.1} parent=11 // pred_region
          _
        $region28: #{ae_forward.1} parent=11 // pred_fallthru
          _
        // Predicated region
        $region29: #{ae_forward.1} parent=11 // pred_check
          %p221 = pneg %p147
        $region30: #{ae_forward.1} parent=11 // pred_check_branch
          %223 = sbr.rel (%p221) target = $region32
        $region31: #{ae_forward.1} parent=11 // pred_region
          _
        $region32: #{ae_forward.1} parent=11 // pred_fallthru
          _
        // Predicated region
        $region33: #{ae_forward.1} parent=11 // pred_check
          %p224 = pneg %p168
        $region34: #{ae_forward.1} parent=11 // pred_check_branch
          %226 = sbr.rel (%p224) target = $region36
        $region35: #{ae_forward.1} parent=11 // pred_region
          _
        $region36: #{ae_forward.1} parent=11 // pred_fallthru
          _
      $region12: #{ae_forward.1} parent=5 // pred_fallthru
        _
      %p227 = scmp.lt.s32.totalorder %s16, 2
      // Predicated region
      $region37: #{ae_forward.1} parent=5 // pred_check
        %p228 = pneg %p227
      $region38: #{ae_forward.1} parent=5 // pred_check_branch
        %230 = sbr.rel (%p228) target = $region40
      $region39: #{ae_forward.1} parent=5 // pred_region
        // Predicated region
        $region41: #{ae_forward.1} parent=39 // pred_check
          %p231 = pneg %p36
        $region42: #{ae_forward.1} parent=39 // pred_check_branch
          %233 = sbr.rel (%p231) target = $region44
        $region43: #{ae_forward.1} parent=39 // pred_region
          %p234 = scmp.lt.s32.totalorder %s16, 1
          %s235 = scalar_select %p234, %s16, 1
          %s236 = smul.addr %s235, 7
          %s237 = smul.addr %s236, 8
          %s238 = scalar_lea.vmem %s0, %s237
        $region44: #{ae_forward.1} parent=39 // pred_fallthru
          _
      $region40: #{ae_forward.1} parent=5 // pred_fallthru
        _
      %p239 = scmp.le.s32.totalorder 1, %s16
      %p240 = scmp.lt.s32.totalorder %s16, 3
      %p241 = pnand %p239, %p240
      %p242 = pneg %p241
      // Predicated region
      $region45: #{ae_forward.1} parent=5 // pred_check
        _
      $region46: #{ae_forward.1} parent=5 // pred_check_branch
        %244 = sbr.rel (%p241) target = $region48
      $region47: #{ae_forward.1} parent=5 // pred_region
        %s245 = ssub.s32 %s16, 1
        %p246 = scmp.lt.s32.totalorder %s21, 1
        %s247 = scalar_select %p246, %s21, 1
        %s248 = smul.addr %s247, 7
        %s249 = smul.addr %s248, 8
        %s250 = scalar_lea.vmem %s0, %s249
        %p251 = pneg %p42
        %p252 = pneg %p39
        %p253 = pneg %p63
        %p254 = pneg %p60
        %p255 = pneg %p84
        %p256 = pneg %p81
        %p257 = pneg %p105
        %p258 = pneg %p102
        %p259 = pneg %p126
        %p260 = pneg %p123
        %p261 = pneg %p147
        %p262 = pneg %p144
        %p263 = pneg %p168
        %p264 = pneg %p165
        %p265 = pneg %p194
        %p266 = pneg %p191
        %s267 = sand.u32 %s181, 1
        %s268 = scalar_lea.sflag [#allocation3], %s267
        %s269 = sand.u32 %s181, 1
        %s270 = smul.addr %s269, 56
        %s271 = scalar_lea.vmem [#allocation2], %s270
        %p272 = scmp.lt.s32.totalorder %s21, 1
        %s273 = scalar_select %p272, %s21, 1
        %s274 = smul.addr %s273, 7
        %s275 = smul.addr %s274, 8
        %s276 = scalar_lea.vmem %s0, %s275
        %v277 = vld [vmem:[%s276] sm:$0xff]
        %v278 = vld [vmem:[%s276 + $0x8] sm:$0xff]
        %v279 = vld [vmem:[%s276 + $0x10] sm:$0xff]
        %v280 = vld [vmem:[%s276 + $0x18] sm:$0xff]
        %v281 = vld [vmem:[%s276 + $0x20] sm:$0xff]
        %v282 = vld [vmem:[%s276 + $0x28] sm:$0xff]
        %v283 = vld [vmem:[%s276 + $0x30] sm:$0xff]
        %v284 = vld [vmem:[%s1] sm:$0xff]
        %v285 = vld [vmem:[%s1 + $0x8] sm:$0xff]
        %v286 = vld [vmem:[%s1 + $0x10] sm:$0xff]
        %v287 = vld [vmem:[%s1 + $0x18] sm:$0xff]
        %v288 = vld [vmem:[%s1 + $0x20] sm:$0xff]
        %v289 = vld [vmem:[%s1 + $0x28] sm:$0xff]
        %v290 = vld [vmem:[%s1 + $0x30] sm:$0xff]
        %v291 = vld [vmem:[%s1 + $0x38] sm:$0xff]
        %v292 = vld [vmem:[%s1 + $0x40] sm:$0xff]
        %v293 = vld [vmem:[%s1 + $0x48] sm:$0xff]
        %v294 = vld [vmem:[%s1 + $0x50] sm:$0xff]
        %v295 = vld [vmem:[%s1 + $0x58] sm:$0xff]
        %v296 = vld [vmem:[%s1 + $0x60] sm:$0xff]
        %v297 = vld [vmem:[%s1 + $0x68] sm:$0xff]
        %v298 = vld [vmem:[%s1 + $0x70] sm:$0xff]
        %v299 = vld [vmem:[%s1 + $0x78] sm:$0xff]
        %v300 = vld [vmem:[%s1 + $0x80] sm:$0xff]
        %v301 = vld [vmem:[%s1 + $0x88] sm:$0xff]
        %v302 = vld [vmem:[%s1 + $0x90] sm:$0xff]
        %v303 = vld [vmem:[%s1 + $0x98] sm:$0xff]
        %v304 = vld [vmem:[%s1 + $0xa0] sm:$0xff]
        %v305 = vld [vmem:[%s1 + $0xa8] sm:$0xff]
        %v306 = vld [vmem:[%s1 + $0xb0] sm:$0xff]
        %v307 = vld [vmem:[%s1 + $0xb8] sm:$0xff]
        %v308 = vld [vmem:[%s1 + $0xc0] sm:$0xff]
        %v309 = vld [vmem:[%s1 + $0xc8] sm:$0xff]
        %v310 = vld [vmem:[%s1 + $0xd0] sm:$0xff]
        %v311 = vld [vmem:[%s1 + $0xd8] sm:$0xff]
        %v312 = vld [vmem:[%s1 + $0xe0] sm:$0xff]
        %v313 = vld [vmem:[%s1 + $0xe8] sm:$0xff]
        %v314 = vld [vmem:[%s1 + $0xf0] sm:$0xff]
        %v315 = vld [vmem:[%s1 + $0xf8] sm:$0xff]
        %v316 = vld [vmem:[%s1 + $0x100] sm:$0xff]
        %v317 = vld [vmem:[%s1 + $0x108] sm:$0xff]
        %v318 = vld [vmem:[%s1 + $0x110] sm:$0xff]
        %v319 = vld [vmem:[%s1 + $0x118] sm:$0xff]
        %v320 = vld [vmem:[%s1 + $0x120] sm:$0xff]
        %v321 = vld [vmem:[%s1 + $0x128] sm:$0xff]
        %v322 = vld [vmem:[%s1 + $0x130] sm:$0xff]
        %v323 = vld [vmem:[%s1 + $0x138] sm:$0xff]
        %v324 = vld [vmem:[%s1 + $0x140] sm:$0xff]
        %v325 = vld [vmem:[%s1 + $0x148] sm:$0xff]
        %v326 = vld [vmem:[%s1 + $0x150] sm:$0xff]
        %v327 = vld [vmem:[%s1 + $0x158] sm:$0xff]
        %v328 = vld [vmem:[%s1 + $0x160] sm:$0xff]
        %v329 = vld [vmem:[%s1 + $0x168] sm:$0xff]
        %v330 = vld [vmem:[%s1 + $0x170] sm:$0xff]
        %v331 = vld [vmem:[%s1 + $0x178] sm:$0xff]
        %v332 = vld [vmem:[%s1 + $0x180] sm:$0xff]
        %v333 = vld [vmem:[%s1 + $0x188] sm:$0xff]
        %v334 = vld [vmem:[%s1 + $0x190] sm:$0xff]
        %v335 = vld [vmem:[%s1 + $0x198] sm:$0xff]
        %v336 = vld [vmem:[%s1 + $0x1a0] sm:$0xff]
        %v337 = vld [vmem:[%s1 + $0x1a8] sm:$0xff]
        %v338 = vld [vmem:[%s1 + $0x1b0] sm:$0xff]
        %v339 = vld [vmem:[%s1 + $0x1b8] sm:$0xff]
        %v340 = vld [vmem:[%s1 + $0x1c0] sm:$0xff]
        %v341 = vld [vmem:[%s1 + $0x1c8] sm:$0xff]
        %v342 = vld [vmem:[%s1 + $0x1d0] sm:$0xff]
        %v343 = vld [vmem:[%s1 + $0x1d8] sm:$0xff]
        %v344 = vld [vmem:[%s1 + $0x1e0] sm:$0xff]
        %v345 = vld [vmem:[%s1 + $0x1e8] sm:$0xff]
        %v346 = vld [vmem:[%s1 + $0x1f0] sm:$0xff]
        %v347 = vld [vmem:[%s1 + $0x1f8] sm:$0xff]
        %v348 = vld [vmem:[%s1 + $0x200] sm:$0xff]
        %v349 = vld [vmem:[%s1 + $0x208] sm:$0xff]
        %v350 = vld [vmem:[%s1 + $0x210] sm:$0xff]
        %v351 = vld [vmem:[%s1 + $0x218] sm:$0xff]
        %v352 = vld [vmem:[%s1 + $0x220] sm:$0xff]
        %v353 = vld [vmem:[%s1 + $0x228] sm:$0xff]
        %v354 = vld [vmem:[%s1 + $0x230] sm:$0xff]
        %v355 = vld [vmem:[%s1 + $0x238] sm:$0xff]
        %v356 = vld [vmem:[%s1 + $0x240] sm:$0xff]
        %v357 = vld [vmem:[%s1 + $0x248] sm:$0xff]
        %v358 = vld [vmem:[%s1 + $0x250] sm:$0xff]
        %v359 = vld [vmem:[%s1 + $0x258] sm:$0xff]
        %v360 = vld [vmem:[%s1 + $0x260] sm:$0xff]
        %v361 = vld [vmem:[%s1 + $0x268] sm:$0xff]
        %v362 = vld [vmem:[%s1 + $0x270] sm:$0xff]
        %v363 = vld [vmem:[%s1 + $0x278] sm:$0xff]
        %v364 = vld [vmem:[%s1 + $0x280] sm:$0xff]
        %v365 = vld [vmem:[%s1 + $0x288] sm:$0xff]
        %v366 = vld [vmem:[%s1 + $0x290] sm:$0xff]
        %v367 = vld [vmem:[%s1 + $0x298] sm:$0xff]
        %v368 = vld [vmem:[%s1 + $0x2a0] sm:$0xff]
        %v369 = vld [vmem:[%s1 + $0x2a8] sm:$0xff]
        %v370 = vld [vmem:[%s1 + $0x2b0] sm:$0xff]
        %v371 = vld [vmem:[%s1 + $0x2b8] sm:$0xff]
        %v372 = vld [vmem:[%s1 + $0x2c0] sm:$0xff]
        %v373 = vld [vmem:[%s1 + $0x2c8] sm:$0xff]
        %v374 = vld [vmem:[%s1 + $0x2d0] sm:$0xff]
        %v375 = vld [vmem:[%s1 + $0x2d8] sm:$0xff]
        %v376 = vld [vmem:[%s1 + $0x2e0] sm:$0xff]
        %v377 = vld [vmem:[%s1 + $0x2e8] sm:$0xff]
        %v378 = vld [vmem:[%s1 + $0x2f0] sm:$0xff]
        %v379 = vld [vmem:[%s1 + $0x2f8] sm:$0xff]
        %v380 = vld [vmem:[%s1 + $0x300] sm:$0xff]
        %v381 = vld [vmem:[%s1 + $0x308] sm:$0xff]
        %v382 = vld [vmem:[%s2] sm:$0x1]
        %v384 = vlaneseq
        %v385 = vshrl.u32 %v384, 7
        %v386 = vsub.s32 0, %v385
        %v387 = vrot.slane %v382, %v386
        %vm389 = vcmask 130048
        %v391 = vsel %vm389, %v283, 0
        %393 = vmatprep.subr.mxu0 0.0
        %394 = vmatpush1.msra.mxu0 %v284
        %395 = vmatprep.subr.mxu0 0.0
        %396 = vmatpush1.msra.mxu0 %v285
        %397 = vmatprep.subr.mxu0 0.0
        %398 = vmatpush1.msra.mxu0 %v286
        %399 = vmatprep.subr.mxu0 0.0
        %400 = vmatpush1.msra.mxu0 %v287
        %401 = vmatprep.subr.mxu0 0.0
        %402 = vmatpush1.msra.mxu0 %v288
        %403 = vmatprep.subr.mxu0 0.0
        %404 = vmatpush1.msra.mxu0 %v289
        %405 = vmatprep.subr.mxu0 0.0
        %406 = vmatpush1.msra.mxu0 %v290
        %407 = vmatprep.subr.mxu0 0.0
        %408 = vmatpush1.msra.mxu0 %v291
        %409 = vmatprep.subr.mxu0 0.0
        %410 = vmatpush1.msra.mxu0 %v292
        %411 = vmatprep.subr.mxu0 0.0
        %412 = vmatpush1.msra.mxu0 %v293
        %413 = vmatprep.subr.mxu0 0.0
        %414 = vmatpush1.msra.mxu0 %v294
        %415 = vmatprep.subr.mxu0 0.0
        %416 = vmatpush1.msra.mxu0 %v295
        %417 = vmatprep.subr.mxu0 0.0
        %418 = vmatpush1.msra.mxu0 %v296
        %419 = vmatprep.subr.mxu0 0.0
        %420 = vmatpush1.msra.mxu0 %v297
        %421 = vmatprep.subr.mxu0 0.0
        %422 = vmatpush1.msra.mxu0 %v298
        %423 = vmatprep.subr.mxu0 0.0
        %424 = vmatpush1.msra.mxu0 %v299
        %425 = vmatprep.subr.mxu0 0.0
        %426 = vmatpush1.msra.mxu0 %v300
        %427 = vmatprep.subr.mxu0 0.0
        %428 = vmatpush1.msra.mxu0 %v301
        %429 = vmatprep.subr.mxu0 0.0
        %430 = vmatpush1.msra.mxu0 %v302
        %431 = vmatprep.subr.mxu0 0.0
        %432 = vmatpush1.msra.mxu0 %v303
        %433 = vmatprep.subr.mxu0 0.0
        %434 = vmatpush1.msra.mxu0 %v304
        %435 = vmatprep.subr.mxu0 0.0
        %436 = vmatpush1.msra.mxu0 %v305
        %437 = vmatprep.subr.mxu0 0.0
        %438 = vmatpush1.msra.mxu0 %v306
        %439 = vmatprep.subr.mxu0 0.0
        %440 = vmatpush1.msra.mxu0 %v307
        %441 = vmatprep.subr.mxu0 0.0
        %442 = vmatpush1.msra.mxu0 %v308
        %443 = vmatprep.subr.mxu0 0.0
        %444 = vmatpush1.msra.mxu0 %v309
        %445 = vmatprep.subr.mxu0 0.0
        %446 = vmatpush1.msra.mxu0 %v310
        %447 = vmatprep.subr.mxu0 0.0
        %448 = vmatpush1.msra.mxu0 %v311
        %449 = vmatprep.subr.mxu0 0.0
        %450 = vmatpush1.msra.mxu0 %v312
        %451 = vmatprep.subr.mxu0 0.0
        %452 = vmatpush1.msra.mxu0 %v313
        %453 = vmatprep.subr.mxu0 0.0
        %454 = vmatpush1.msra.mxu0 %v314
        %455 = vmatprep.subr.mxu0 0.0
        %456 = vmatpush1.msra.mxu0 %v315
        %457 = vmatprep.mubr.f32.mxu0 %v278
        %458 = vmatmul.mubr.f32.gmra.mrb[0].mxu0 %v277
        %v459 = vpop.f32.mrb[0].mxu0
        %v460 = vadd.f32 %v387, %v459
        %v461 = vpop.f32.mrb[0].mxu0
        %462 = vdwg.mxu0
        %463 = vmatprep.subr.mxu0 0.0
        %464 = vmatpush1.msra.mxu0 %v316
        %465 = vmatprep.subr.mxu0 0.0
        %466 = vmatpush1.msra.mxu0 %v317
        %467 = vmatprep.subr.mxu0 0.0
        %468 = vmatpush1.msra.mxu0 %v318
        %469 = vmatprep.subr.mxu0 0.0
        %470 = vmatpush1.msra.mxu0 %v319
        %471 = vmatprep.subr.mxu0 0.0
        %472 = vmatpush1.msra.mxu0 %v320
        %473 = vmatprep.subr.mxu0 0.0
        %474 = vmatpush1.msra.mxu0 %v321
        %475 = vmatprep.subr.mxu0 0.0
        %476 = vmatpush1.msra.mxu0 %v322
        %477 = vmatprep.subr.mxu0 0.0
        %478 = vmatpush1.msra.mxu0 %v323
        %479 = vmatprep.subr.mxu0 0.0
        %480 = vmatpush1.msra.mxu0 %v324
        %481 = vmatprep.subr.mxu0 0.0
        %482 = vmatpush1.msra.mxu0 %v325
        %483 = vmatprep.subr.mxu0 0.0
        %484 = vmatpush1.msra.mxu0 %v326
        %485 = vmatprep.subr.mxu0 0.0
        %486 = vmatpush1.msra.mxu0 %v327
        %487 = vmatprep.subr.mxu0 0.0
        %488 = vmatpush1.msra.mxu0 %v328
        %489 = vmatprep.subr.mxu0 0.0
        %490 = vmatpush1.msra.mxu0 %v329
        %491 = vmatprep.subr.mxu0 0.0
        %492 = vmatpush1.msra.mxu0 %v330
        %493 = vmatprep.subr.mxu0 0.0
        %494 = vmatpush1.msra.mxu0 %v331
        %495 = vmatprep.subr.mxu0 0.0
        %496 = vmatpush1.msra.mxu0 %v332
        %497 = vmatprep.subr.mxu0 0.0
        %498 = vmatpush1.msra.mxu0 %v333
        %499 = vmatprep.subr.mxu0 0.0
        %500 = vmatpush1.msra.mxu0 %v334
        %501 = vmatprep.subr.mxu0 0.0
        %502 = vmatpush1.msra.mxu0 %v335
        %503 = vmatprep.subr.mxu0 0.0
        %504 = vmatpush1.msra.mxu0 %v336
        %505 = vmatprep.subr.mxu0 0.0
        %506 = vmatpush1.msra.mxu0 %v337
        %507 = vmatprep.subr.mxu0 0.0
        %508 = vmatpush1.msra.mxu0 %v338
        %509 = vmatprep.subr.mxu0 0.0
        %510 = vmatpush1.msra.mxu0 %v339
        %511 = vmatprep.subr.mxu0 0.0
        %512 = vmatpush1.msra.mxu0 %v340
        %513 = vmatprep.subr.mxu0 0.0
        %514 = vmatpush1.msra.mxu0 %v341
        %515 = vmatprep.subr.mxu0 0.0
        %516 = vmatpush1.msra.mxu0 %v342
        %517 = vmatprep.subr.mxu0 0.0
        %518 = vmatpush1.msra.mxu0 %v343
        %519 = vmatprep.subr.mxu0 0.0
        %520 = vmatpush1.msra.mxu0 %v344
        %521 = vmatprep.subr.mxu0 0.0
        %522 = vmatpush1.msra.mxu0 %v345
        %523 = vmatprep.subr.mxu0 0.0
        %524 = vmatpush1.msra.mxu0 %v346
        %525 = vmatprep.subr.mxu0 0.0
        %526 = vmatpush1.msra.mxu0 %v347
        %527 = vmatprep.mubr.f32.mxu0 %v280
        %528 = vmatmul.mubr.f32.gmra.mrb[0].mxu0 %v279
        %v529 = vpop.f32.mrb[0].mxu0
        %v530 = vadd.f32 %v460, %v529
        %v531 = vpop.f32.mrb[0].mxu0
        %532 = vdwg.mxu0
        %533 = vmatprep.subr.mxu0 0.0
        %534 = vmatpush1.msra.mxu0 %v348
        %535 = vmatprep.subr.mxu0 0.0
        %536 = vmatpush1.msra.mxu0 %v349
        %537 = vmatprep.subr.mxu0 0.0
        %538 = vmatpush1.msra.mxu0 %v350
        %539 = vmatprep.subr.mxu0 0.0
        %540 = vmatpush1.msra.mxu0 %v351
        %541 = vmatprep.subr.mxu0 0.0
        %542 = vmatpush1.msra.mxu0 %v352
        %543 = vmatprep.subr.mxu0 0.0
        %544 = vmatpush1.msra.mxu0 %v353
        %545 = vmatprep.subr.mxu0 0.0
        %546 = vmatpush1.msra.mxu0 %v354
        %547 = vmatprep.subr.mxu0 0.0
        %548 = vmatpush1.msra.mxu0 %v355
        %549 = vmatprep.subr.mxu0 0.0
        %550 = vmatpush1.msra.mxu0 %v356
        %551 = vmatprep.subr.mxu0 0.0
        %552 = vmatpush1.msra.mxu0 %v357
        %553 = vmatprep.subr.mxu0 0.0
        %554 = vmatpush1.msra.mxu0 %v358
        %555 = vmatprep.subr.mxu0 0.0
        %556 = vmatpush1.msra.mxu0 %v359
        %557 = vmatprep.subr.mxu0 0.0
        %558 = vmatpush1.msra.mxu0 %v360
        %559 = vmatprep.subr.mxu0 0.0
        %560 = vmatpush1.msra.mxu0 %v361
        %561 = vmatprep.subr.mxu0 0.0
        %562 = vmatpush1.msra.mxu0 %v362
        %563 = vmatprep.subr.mxu0 0.0
        %564 = vmatpush1.msra.mxu0 %v363
        %565 = vmatprep.subr.mxu0 0.0
        %566 = vmatpush1.msra.mxu0 %v364
        %567 = vmatprep.subr.mxu0 0.0
        %568 = vmatpush1.msra.mxu0 %v365
        %569 = vmatprep.subr.mxu0 0.0
        %570 = vmatpush1.msra.mxu0 %v366
        %571 = vmatprep.subr.mxu0 0.0
        %572 = vmatpush1.msra.mxu0 %v367
        %573 = vmatprep.subr.mxu0 0.0
        %574 = vmatpush1.msra.mxu0 %v368
        %575 = vmatprep.subr.mxu0 0.0
        %576 = vmatpush1.msra.mxu0 %v369
        %577 = vmatprep.subr.mxu0 0.0
        %578 = vmatpush1.msra.mxu0 %v370
        %579 = vmatprep.subr.mxu0 0.0
        %580 = vmatpush1.msra.mxu0 %v371
        %581 = vmatprep.subr.mxu0 0.0
        %582 = vmatpush1.msra.mxu0 %v372
        %583 = vmatprep.subr.mxu0 0.0
        %584 = vmatpush1.msra.mxu0 %v373
        %585 = vmatprep.subr.mxu0 0.0
        %586 = vmatpush1.msra.mxu0 %v374
        %587 = vmatprep.subr.mxu0 0.0
        %588 = vmatpush1.msra.mxu0 %v375
        %589 = vmatprep.subr.mxu0 0.0
        %590 = vmatpush1.msra.mxu0 %v376
        %591 = vmatprep.subr.mxu0 0.0
        %592 = vmatpush1.msra.mxu0 %v377
        %593 = vmatprep.subr.mxu0 0.0
        %594 = vmatpush1.msra.mxu0 %v378
        %595 = vmatprep.subr.mxu0 0.0
        %596 = vmatpush1.msra.mxu0 %v379
        %597 = vmatprep.mubr.f32.mxu0 %v282
        %598 = vmatmul.mubr.f32.gmra.mrb[0].mxu0 %v281
        %v599 = vpop.f32.mrb[0].mxu0
        %v600 = vadd.f32 %v530, %v599
        %v601 = vpop.f32.mrb[0].mxu0
        %602 = vdwg.mxu0
        %603 = vmatprep.subr.mxu0 0.0
        %604 = vmatpush1.msra.mxu0 %v380
        %605 = vmatprep.subr.mxu0 0.0
        %606 = vmatpush1.msra.mxu0 %v381
        %607 = vmatprep.subr.mxu0 0.0
        %608 = vmatpush1.msra.mxu0 0.0
        %609 = vmatprep.subr.mxu0 0.0
        %610 = vmatpush1.msra.mxu0 0.0
        %611 = vmatprep.subr.mxu0 0.0
        %612 = vmatpush1.msra.mxu0 0.0
        %613 = vmatprep.subr.mxu0 0.0
        %614 = vmatpush1.msra.mxu0 0.0
        %615 = vmatprep.subr.mxu0 0.0
        %616 = vmatpush1.msra.mxu0 0.0
        %617 = vmatprep.subr.mxu0 0.0
        %618 = vmatpush1.msra.mxu0 0.0
        %619 = vmatprep.subr.mxu0 0.0
        %620 = vmatpush1.msra.mxu0 0.0
        %621 = vmatprep.subr.mxu0 0.0
        %622 = vmatpush1.msra.mxu0 0.0
        %623 = vmatprep.subr.mxu0 0.0
        %624 = vmatpush1.msra.mxu0 0.0
        %625 = vmatprep.subr.mxu0 0.0
        %626 = vmatpush1.msra.mxu0 0.0
        %627 = vmatprep.subr.mxu0 0.0
        %628 = vmatpush1.msra.mxu0 0.0
        %629 = vmatprep.subr.mxu0 0.0
        %630 = vmatpush1.msra.mxu0 0.0
        %631 = vmatprep.subr.mxu0 0.0
        %632 = vmatpush1.msra.mxu0 0.0
        %633 = vmatprep.subr.mxu0 0.0
        %634 = vmatpush1.msra.mxu0 0.0
        %635 = vmatprep.subr.mxu0 0.0
        %636 = vmatpush1.msra.mxu0 0.0
        %637 = vmatprep.subr.mxu0 0.0
        %638 = vmatpush1.msra.mxu0 0.0
        %639 = vmatprep.subr.mxu0 0.0
        %640 = vmatpush1.msra.mxu0 0.0
        %641 = vmatprep.subr.mxu0 0.0
        %642 = vmatpush1.msra.mxu0 0.0
        %643 = vmatprep.subr.mxu0 0.0
        %644 = vmatpush1.msra.mxu0 0.0
        %645 = vmatprep.subr.mxu0 0.0
        %646 = vmatpush1.msra.mxu0 0.0
        %647 = vmatprep.subr.mxu0 0.0
        %648 = vmatpush1.msra.mxu0 0.0
        %649 = vmatprep.subr.mxu0 0.0
        %650 = vmatpush1.msra.mxu0 0.0
        %651 = vmatprep.subr.mxu0 0.0
        %652 = vmatpush1.msra.mxu0 0.0
        %653 = vmatprep.subr.mxu0 0.0
        %654 = vmatpush1.msra.mxu0 0.0
        %655 = vmatprep.subr.mxu0 0.0
        %656 = vmatpush1.msra.mxu0 0.0
        %657 = vmatprep.subr.mxu0 0.0
        %658 = vmatpush1.msra.mxu0 0.0
        %659 = vmatprep.subr.mxu0 0.0
        %660 = vmatpush1.msra.mxu0 0.0
        %661 = vmatprep.subr.mxu0 0.0
        %662 = vmatpush1.msra.mxu0 0.0
        %663 = vmatprep.subr.mxu0 0.0
        %664 = vmatpush1.msra.mxu0 0.0
        %665 = vmatprep.subr.mxu0 0.0
        %666 = vmatpush1.msra.mxu0 0.0
        %667 = vmatprep.mubr.f32.mxu0 0.0
        %668 = vmatmul.mubr.f32.gmra.mrb[0].mxu0 %v391
        %v669 = vpop.f32.mrb[0].mxu0
        %v670 = vadd.f32 %v600, %v669
        %v671 = vpop.f32.mrb[0].mxu0
        %672 = vdwg.mxu0
        %v673 = vmax.f32 %v670, 0.0
        %v674 = vld [vmem:[%s3] sm:$0xff]
        %v675 = vld [vmem:[%s3 + $0x8] sm:$0xff]
        %v676 = vld [vmem:[%s3 + $0x10] sm:$0xff]
        %v677 = vld [vmem:[%s3 + $0x18] sm:$0xff]
        %v678 = vld [vmem:[%s3 + $0x20] sm:$0xff]
        %v679 = vld [vmem:[%s3 + $0x28] sm:$0xff]
        %v680 = vld [vmem:[%s3 + $0x30] sm:$0xff]
        %v681 = vld [vmem:[%s3 + $0x38] sm:$0xff]
        %v682 = vld [vmem:[%s3 + $0x40] sm:$0xff]
        %v683 = vld [vmem:[%s3 + $0x48] sm:$0xff]
        %v684 = vld [vmem:[%s3 + $0x50] sm:$0xff]
        %v685 = vld [vmem:[%s3 + $0x58] sm:$0xff]
        %v686 = vld [vmem:[%s3 + $0x60] sm:$0xff]
        %v687 = vld [vmem:[%s3 + $0x68] sm:$0xff]
        %v688 = vld [vmem:[%s3 + $0x70] sm:$0xff]
        %v689 = vld [vmem:[%s3 + $0x78] sm:$0xff]
        %v690 = vld [vmem:[%s4] sm:$0x1]
        %v692 = vlaneseq
        %v693 = vshrl.u32 %v692, 7
        %v694 = vsub.s32 0, %v693
        %v695 = vrot.slane %v690, %v694
        %697 = vmatprep.subr.mxu0 0.0
        %698 = vmatpush1.msra.mxu0 %v674
        %699 = vmatprep.subr.mxu0 0.0
        %700 = vmatpush1.msra.mxu0 %v675
        %701 = vmatprep.subr.mxu0 0.0
        %702 = vmatpush1.msra.mxu0 %v676
        %703 = vmatprep.subr.mxu0 0.0
        %704 = vmatpush1.msra.mxu0 %v677
        %705 = vmatprep.subr.mxu0 0.0
        %706 = vmatpush1.msra.mxu0 %v678
        %707 = vmatprep.subr.mxu0 0.0
        %708 = vmatpush1.msra.mxu0 %v679
        %709 = vmatprep.subr.mxu0 0.0
        %710 = vmatpush1.msra.mxu0 %v680
        %711 = vmatprep.subr.mxu0 0.0
        %712 = vmatpush1.msra.mxu0 %v681
        %713 = vmatprep.subr.mxu0 0.0
        %714 = vmatpush1.msra.mxu0 %v682
        %715 = vmatprep.subr.mxu0 0.0
        %716 = vmatpush1.msra.mxu0 %v683
        %717 = vmatprep.subr.mxu0 0.0
        %718 = vmatpush1.msra.mxu0 %v684
        %719 = vmatprep.subr.mxu0 0.0
        %720 = vmatpush1.msra.mxu0 %v685
        %721 = vmatprep.subr.mxu0 0.0
        %722 = vmatpush1.msra.mxu0 %v686
        %723 = vmatprep.subr.mxu0 0.0
        %724 = vmatpush1.msra.mxu0 %v687
        %725 = vmatprep.subr.mxu0 0.0
        %726 = vmatpush1.msra.mxu0 %v688
        %727 = vmatprep.subr.mxu0 0.0
        %728 = vmatpush1.msra.mxu0 %v689
        %729 = vmatprep.subr.mxu0 0.0
        %730 = vmatpush1.msra.mxu0 0.0
        %731 = vmatprep.subr.mxu0 0.0
        %732 = vmatpush1.msra.mxu0 0.0
        %733 = vmatprep.subr.mxu0 0.0
        %734 = vmatpush1.msra.mxu0 0.0
        %735 = vmatprep.subr.mxu0 0.0
        %736 = vmatpush1.msra.mxu0 0.0
        %737 = vmatprep.subr.mxu0 0.0
        %738 = vmatpush1.msra.mxu0 0.0
        %739 = vmatprep.subr.mxu0 0.0
        %740 = vmatpush1.msra.mxu0 0.0
        %741 = vmatprep.subr.mxu0 0.0
        %742 = vmatpush1.msra.mxu0 0.0
        %743 = vmatprep.subr.mxu0 0.0
        %744 = vmatpush1.msra.mxu0 0.0
        %745 = vmatprep.subr.mxu0 0.0
        %746 = vmatpush1.msra.mxu0 0.0
        %747 = vmatprep.subr.mxu0 0.0
        %748 = vmatpush1.msra.mxu0 0.0
        %749 = vmatprep.subr.mxu0 0.0
        %750 = vmatpush1.msra.mxu0 0.0
        %751 = vmatprep.subr.mxu0 0.0
        %752 = vmatpush1.msra.mxu0 0.0
        %753 = vmatprep.subr.mxu0 0.0
        %754 = vmatpush1.msra.mxu0 0.0
        %755 = vmatprep.subr.mxu0 0.0
        %756 = vmatpush1.msra.mxu0 0.0
        %757 = vmatprep.subr.mxu0 0.0
        %758 = vmatpush1.msra.mxu0 0.0
        %759 = vmatprep.subr.mxu0 0.0
        %760 = vmatpush1.msra.mxu0 0.0
        %761 = vmatprep.mubr.f32.mxu0 0.0
        %762 = vmatmul.mubr.f32.gmra.mrb[0].mxu0 %v673
        %v763 = vpop.f32.mrb[0].mxu0
        %v764 = vadd.f32 %v695, %v763
        %v765 = vpop.f32.mrb[0].mxu0
        %766 = vdwg.mxu0
        %v767 = vmax.f32 %v764, 0.0
        %v768 = vld [vmem:[%s5] sm:$0xff]
        %v769 = vld [vmem:[%s5 + $0x8] sm:$0xff]
        %v770 = vld [vmem:[%s5 + $0x10] sm:$0xff]
        %v771 = vld [vmem:[%s5 + $0x18] sm:$0xff]
        %v772 = vld [vmem:[%s5 + $0x20] sm:$0xff]
        %v773 = vld [vmem:[%s5 + $0x28] sm:$0xff]
        %v774 = vld [vmem:[%s5 + $0x30] sm:$0xff]
        %v775 = vld [vmem:[%s5 + $0x38] sm:$0xff]
        %v776 = vld [vmem:[%s5 + $0x40] sm:$0xff]
        %v777 = vld [vmem:[%s5 + $0x48] sm:$0xff]
        %v778 = vld [vmem:[%s5 + $0x50] sm:$0xff]
        %v779 = vld [vmem:[%s5 + $0x58] sm:$0xff]
        %v780 = vld [vmem:[%s5 + $0x60] sm:$0xff]
        %v781 = vld [vmem:[%s5 + $0x68] sm:$0xff]
        %v782 = vld [vmem:[%s5 + $0x70] sm:$0xff]
        %v783 = vld [vmem:[%s5 + $0x78] sm:$0xff]
        %v784 = vld [vmem:[%s5 + $0x80] sm:$0xff]
        %v785 = vld [vmem:[%s5 + $0x88] sm:$0xff]
        %v786 = vld [vmem:[%s5 + $0x90] sm:$0xff]
        %v787 = vld [vmem:[%s5 + $0x98] sm:$0xff]
        %v788 = vld [vmem:[%s5 + $0xa0] sm:$0xff]
        %v789 = vld [vmem:[%s5 + $0xa8] sm:$0xff]
        %v790 = vld [vmem:[%s5 + $0xb0] sm:$0xff]
        %v791 = vld [vmem:[%s5 + $0xb8] sm:$0xff]
        %v792 = vld [vmem:[%s5 + $0xc0] sm:$0xff]
        %v793 = vld [vmem:[%s5 + $0xc8] sm:$0xff]
        %v794 = vld [vmem:[%s5 + $0xd0] sm:$0xff]
        %v795 = vld [vmem:[%s5 + $0xd8] sm:$0xff]
        %v796 = vld [vmem:[%s5 + $0xe0] sm:$0xff]
        %v797 = vld [vmem:[%s5 + $0xe8] sm:$0xff]
        %v798 = vld [vmem:[%s5 + $0xf0] sm:$0xff]
        %v799 = vld [vmem:[%s5 + $0xf8] sm:$0xff]
        %v800 = vld [vmem:[%s5 + $0x100] sm:$0xff]
        %v801 = vld [vmem:[%s5 + $0x108] sm:$0xff]
        %v802 = vld [vmem:[%s5 + $0x110] sm:$0xff]
        %v803 = vld [vmem:[%s5 + $0x118] sm:$0xff]
        %v804 = vld [vmem:[%s5 + $0x120] sm:$0xff]
        %v805 = vld [vmem:[%s5 + $0x128] sm:$0xff]
        %v806 = vld [vmem:[%s5 + $0x130] sm:$0xff]
        %v807 = vld [vmem:[%s5 + $0x138] sm:$0xff]
        %v808 = vld [vmem:[%s5 + $0x140] sm:$0xff]
        %v809 = vld [vmem:[%s5 + $0x148] sm:$0xff]
        %v810 = vld [vmem:[%s5 + $0x150] sm:$0xff]
        %v811 = vld [vmem:[%s5 + $0x158] sm:$0xff]
        %v812 = vld [vmem:[%s5 + $0x160] sm:$0xff]
        %v813 = vld [vmem:[%s5 + $0x168] sm:$0xff]
        %v814 = vld [vmem:[%s5 + $0x170] sm:$0xff]
        %v815 = vld [vmem:[%s5 + $0x178] sm:$0xff]
        %v816 = vld [vmem:[%s5 + $0x180] sm:$0xff]
        %v817 = vld [vmem:[%s5 + $0x188] sm:$0xff]
        %v818 = vld [vmem:[%s5 + $0x190] sm:$0xff]
        %v819 = vld [vmem:[%s5 + $0x198] sm:$0xff]
        %v820 = vld [vmem:[%s5 + $0x1a0] sm:$0xff]
        %v821 = vld [vmem:[%s5 + $0x1a8] sm:$0xff]
        %v822 = vld [vmem:[%s5 + $0x1b0] sm:$0xff]
        %v823 = vld [vmem:[%s5 + $0x1b8] sm:$0xff]
        %v824 = vld [vmem:[%s5 + $0x1c0] sm:$0xff]
        %v825 = vld [vmem:[%s5 + $0x1c8] sm:$0xff]
        %v826 = vld [vmem:[%s5 + $0x1d0] sm:$0xff]
        %v827 = vld [vmem:[%s5 + $0x1d8] sm:$0xff]
        %v828 = vld [vmem:[%s5 + $0x1e0] sm:$0xff]
        %v829 = vld [vmem:[%s5 + $0x1e8] sm:$0xff]
        %v830 = vld [vmem:[%s5 + $0x1f0] sm:$0xff]
        %v831 = vld [vmem:[%s5 + $0x1f8] sm:$0xff]
        %v832 = vld [vmem:[%s5 + $0x200] sm:$0xff]
        %v833 = vld [vmem:[%s5 + $0x208] sm:$0xff]
        %v834 = vld [vmem:[%s5 + $0x210] sm:$0xff]
        %v835 = vld [vmem:[%s5 + $0x218] sm:$0xff]
        %v836 = vld [vmem:[%s5 + $0x220] sm:$0xff]
        %v837 = vld [vmem:[%s5 + $0x228] sm:$0xff]
        %v838 = vld [vmem:[%s5 + $0x230] sm:$0xff]
        %v839 = vld [vmem:[%s5 + $0x238] sm:$0xff]
        %v840 = vld [vmem:[%s5 + $0x240] sm:$0xff]
        %v841 = vld [vmem:[%s5 + $0x248] sm:$0xff]
        %v842 = vld [vmem:[%s5 + $0x250] sm:$0xff]
        %v843 = vld [vmem:[%s5 + $0x258] sm:$0xff]
        %v844 = vld [vmem:[%s5 + $0x260] sm:$0xff]
        %v845 = vld [vmem:[%s5 + $0x268] sm:$0xff]
        %v846 = vld [vmem:[%s5 + $0x270] sm:$0xff]
        %v847 = vld [vmem:[%s5 + $0x278] sm:$0xff]
        %v848 = vld [vmem:[%s5 + $0x280] sm:$0xff]
        %v849 = vld [vmem:[%s5 + $0x288] sm:$0xff]
        %v850 = vld [vmem:[%s5 + $0x290] sm:$0xff]
        %v851 = vld [vmem:[%s5 + $0x298] sm:$0xff]
        %v852 = vld [vmem:[%s5 + $0x2a0] sm:$0xff]
        %v853 = vld [vmem:[%s5 + $0x2a8] sm:$0xff]
        %v854 = vld [vmem:[%s5 + $0x2b0] sm:$0xff]
        %v855 = vld [vmem:[%s5 + $0x2b8] sm:$0xff]
        %v856 = vld [vmem:[%s5 + $0x2c0] sm:$0xff]
        %v857 = vld [vmem:[%s5 + $0x2c8] sm:$0xff]
        %v858 = vld [vmem:[%s5 + $0x2d0] sm:$0xff]
        %v859 = vld [vmem:[%s5 + $0x2d8] sm:$0xff]
        %v860 = vld [vmem:[%s5 + $0x2e0] sm:$0xff]
        %v861 = vld [vmem:[%s5 + $0x2e8] sm:$0xff]
        %v862 = vld [vmem:[%s5 + $0x2f0] sm:$0xff]
        %v863 = vld [vmem:[%s5 + $0x2f8] sm:$0xff]
        %v864 = vld [vmem:[%s5 + $0x300] sm:$0xff]
        %v865 = vld [vmem:[%s5 + $0x308] sm:$0xff]
        %v866 = vld [vmem:[%s5 + $0x310] sm:$0xff]
        %v867 = vld [vmem:[%s5 + $0x318] sm:$0xff]
        %v868 = vld [vmem:[%s5 + $0x320] sm:$0xff]
        %v869 = vld [vmem:[%s5 + $0x328] sm:$0xff]
        %v870 = vld [vmem:[%s5 + $0x330] sm:$0xff]
        %v871 = vld [vmem:[%s5 + $0x338] sm:$0xff]
        %v872 = vld [vmem:[%s5 + $0x340] sm:$0xff]
        %v873 = vld [vmem:[%s5 + $0x348] sm:$0xff]
        %v874 = vld [vmem:[%s5 + $0x350] sm:$0xff]
        %v875 = vld [vmem:[%s5 + $0x358] sm:$0xff]
        %v876 = vld [vmem:[%s5 + $0x360] sm:$0xff]
        %v877 = vld [vmem:[%s5 + $0x368] sm:$0xff]
        %v878 = vld [vmem:[%s5 + $0x370] sm:$0xff]
        %v879 = vld [vmem:[%s5 + $0x378] sm:$0xff]
        %v880 = vld [vmem:[%s6] sm:$0x7f]
        %v882 = vlaneseq
        %v883 = vshrl.u32 %v882, 7
        %v884 = vsub.s32 0, %v883
        %v885 = vrot.slane %v880, %v884
        %v886 = vlaneseq
        %v887 = vshrl.u32 %v886, 7
        %v888 = vsub.s32 1, %v887
        %v889 = vrot.slane %v880, %v888
        %v890 = vlaneseq
        %v891 = vshrl.u32 %v890, 7
        %v892 = vsub.s32 2, %v891
        %v893 = vrot.slane %v880, %v892
        %v894 = vlaneseq
        %v895 = vshrl.u32 %v894, 7
        %v896 = vsub.s32 3, %v895
        %v897 = vrot.slane %v880, %v896
        %v898 = vlaneseq
        %v899 = vshrl.u32 %v898, 7
        %v900 = vsub.s32 4, %v899
        %v901 = vrot.slane %v880, %v900
        %v902 = vlaneseq
        %v903 = vshrl.u32 %v902, 7
        %v904 = vsub.s32 5, %v903
        %v905 = vrot.slane %v880, %v904
        %v906 = vlaneseq
        %v907 = vshrl.u32 %v906, 7
        %v908 = vsub.s32 6, %v907
        %v909 = vrot.slane %v880, %v908
        %917 = vmatprep.subr.mxu0 %v769
        %918 = vmatpush1.msra.mxu0 %v768
        %919 = vmatprep.subr.mxu0 %v776
        %920 = vmatpush1.msra.mxu0 %v775
        %921 = vmatprep.subr.mxu0 %v783
        %922 = vmatpush1.msra.mxu0 %v782
        %923 = vmatprep.subr.mxu0 %v790
        %924 = vmatpush1.msra.mxu0 %v789
        %925 = vmatprep.subr.mxu0 %v797
        %926 = vmatpush1.msra.mxu0 %v796
        %927 = vmatprep.subr.mxu0 %v804
        %928 = vmatpush1.msra.mxu0 %v803
        %929 = vmatprep.subr.mxu0 %v811
        %930 = vmatpush1.msra.mxu0 %v810
        %931 = vmatprep.subr.mxu0 %v818
        %932 = vmatpush1.msra.mxu0 %v817
        %933 = vmatprep.subr.mxu0 %v825
        %934 = vmatpush1.msra.mxu0 %v824
        %935 = vmatprep.subr.mxu0 %v832
        %936 = vmatpush1.msra.mxu0 %v831
        %937 = vmatprep.subr.mxu0 %v839
        %938 = vmatpush1.msra.mxu0 %v838
        %939 = vmatprep.subr.mxu0 %v846
        %940 = vmatpush1.msra.mxu0 %v845
        %941 = vmatprep.subr.mxu0 %v853
        %942 = vmatpush1.msra.mxu0 %v852
        %943 = vmatprep.subr.mxu0 %v860
        %944 = vmatpush1.msra.mxu0 %v859
        %945 = vmatprep.subr.mxu0 %v867
        %946 = vmatpush1.msra.mxu0 %v866
        %947 = vmatprep.subr.mxu0 %v874
        %948 = vmatpush1.msra.mxu0 %v873
        %949 = vmatprep.subr.mxu0 0.0
        %950 = vmatpush1.msra.mxu0 0.0
        %951 = vmatprep.subr.mxu0 0.0
        %952 = vmatpush1.msra.mxu0 0.0
        %953 = vmatprep.subr.mxu0 0.0
        %954 = vmatpush1.msra.mxu0 0.0
        %955 = vmatprep.subr.mxu0 0.0
        %956 = vmatpush1.msra.mxu0 0.0
        %957 = vmatprep.subr.mxu0 0.0
        %958 = vmatpush1.msra.mxu0 0.0
        %959 = vmatprep.subr.mxu0 0.0
        %960 = vmatpush1.msra.mxu0 0.0
        %961 = vmatprep.subr.mxu0 0.0
        %962 = vmatpush1.msra.mxu0 0.0
        %963 = vmatprep.subr.mxu0 0.0
        %964 = vmatpush1.msra.mxu0 0.0
        %965 = vmatprep.subr.mxu0 0.0
        %966 = vmatpush1.msra.mxu0 0.0
        %967 = vmatprep.subr.mxu0 0.0
        %968 = vmatpush1.msra.mxu0 0.0
        %969 = vmatprep.subr.mxu0 0.0
        %970 = vmatpush1.msra.mxu0 0.0
        %971 = vmatprep.subr.mxu0 0.0
        %972 = vmatpush1.msra.mxu0 0.0
        %973 = vmatprep.subr.mxu0 0.0
        %974 = vmatpush1.msra.mxu0 0.0
        %975 = vmatprep.subr.mxu0 0.0
        %976 = vmatpush1.msra.mxu0 0.0
        %977 = vmatprep.subr.mxu0 0.0
        %978 = vmatpush1.msra.mxu0 0.0
        %979 = vmatprep.subr.mxu0 0.0
        %980 = vmatpush1.msra.mxu0 0.0
        %981 = vmatprep.mubr.f32.mxu0 0.0
        %982 = vmatmul.mubr.f32.gmra.mrb[0].mxu0 %v767
        %v983 = vpop.f32.mrb[0].mxu0
        %v984 = vadd.f32 %v885, %v983
        %v985 = vpop.f32.mrb[0].mxu0
        %v986 = vadd.f32 %v889, %v985
        %987 = vdwg.mxu0
        %988 = vmatprep.subr.mxu0 %v771
        %989 = vmatpush1.msra.mxu0 %v770
        %990 = vmatprep.subr.mxu0 %v778
        %991 = vmatpush1.msra.mxu0 %v777
        %992 = vmatprep.subr.mxu0 %v785
        %993 = vmatpush1.msra.mxu0 %v784
        %994 = vmatprep.subr.mxu0 %v792
        %995 = vmatpush1.msra.mxu0 %v791
        %996 = vmatprep.subr.mxu0 %v799
        %997 = vmatpush1.msra.mxu0 %v798
        %998 = vmatprep.subr.mxu0 %v806
        %999 = vmatpush1.msra.mxu0 %v805
        %1000 = vmatprep.subr.mxu0 %v813
        %1001 = vmatpush1.msra.mxu0 %v812
        %1002 = vmatprep.subr.mxu0 %v820
        %1003 = vmatpush1.msra.mxu0 %v819
        %1004 = vmatprep.subr.mxu0 %v827
        %1005 = vmatpush1.msra.mxu0 %v826
        %1006 = vmatprep.subr.mxu0 %v834
        %1007 = vmatpush1.msra.mxu0 %v833
        %1008 = vmatprep.subr.mxu0 %v841
        %1009 = vmatpush1.msra.mxu0 %v840
        %1010 = vmatprep.subr.mxu0 %v848
        %1011 = vmatpush1.msra.mxu0 %v847
        %1012 = vmatprep.subr.mxu0 %v855
        %1013 = vmatpush1.msra.mxu0 %v854
        %1014 = vmatprep.subr.mxu0 %v862
        %1015 = vmatpush1.msra.mxu0 %v861
        %1016 = vmatprep.subr.mxu0 %v869
        %1017 = vmatpush1.msra.mxu0 %v868
        %1018 = vmatprep.subr.mxu0 %v876
        %1019 = vmatpush1.msra.mxu0 %v875
        %1020 = vmatprep.subr.mxu0 0.0
        %1021 = vmatpush1.msra.mxu0 0.0
        %1022 = vmatprep.subr.mxu0 0.0
        %1023 = vmatpush1.msra.mxu0 0.0
        %1024 = vmatprep.subr.mxu0 0.0
        %1025 = vmatpush1.msra.mxu0 0.0
        %1026 = vmatprep.subr.mxu0 0.0
        %1027 = vmatpush1.msra.mxu0 0.0
        %1028 = vmatprep.subr.mxu0 0.0
        %1029 = vmatpush1.msra.mxu0 0.0
        %1030 = vmatprep.subr.mxu0 0.0
        %1031 = vmatpush1.msra.mxu0 0.0
        %1032 = vmatprep.subr.mxu0 0.0
        %1033 = vmatpush1.msra.mxu0 0.0
        %1034 = vmatprep.subr.mxu0 0.0
        %1035 = vmatpush1.msra.mxu0 0.0
        %1036 = vmatprep.subr.mxu0 0.0
        %1037 = vmatpush1.msra.mxu0 0.0
        %1038 = vmatprep.subr.mxu0 0.0
        %1039 = vmatpush1.msra.mxu0 0.0
        %1040 = vmatprep.subr.mxu0 0.0
        %1041 = vmatpush1.msra.mxu0 0.0
        %1042 = vmatprep.subr.mxu0 0.0
        %1043 = vmatpush1.msra.mxu0 0.0
        %1044 = vmatprep.subr.mxu0 0.0
        %1045 = vmatpush1.msra.mxu0 0.0
        %1046 = vmatprep.subr.mxu0 0.0
        %1047 = vmatpush1.msra.mxu0 0.0
        %1048 = vmatprep.subr.mxu0 0.0
        %1049 = vmatpush1.msra.mxu0 0.0
        %1050 = vmatprep.subr.mxu0 0.0
        %1051 = vmatpush1.msra.mxu0 0.0
        %1052 = vmatprep.mubr.f32.mxu0 0.0
        %1053 = vmatmul.mubr.f32.gmra.mrb[0].mxu0 %v767
        %v1054 = vpop.f32.mrb[0].mxu0
        %v1055 = vadd.f32 %v893, %v1054
        %v1056 = vpop.f32.mrb[0].mxu0
        %v1057 = vadd.f32 %v897, %v1056
        %1058 = vdwg.mxu0
        %1059 = vmatprep.subr.mxu0 %v773
        %1060 = vmatpush1.msra.mxu0 %v772
        %1061 = vmatprep.subr.mxu0 %v780
        %1062 = vmatpush1.msra.mxu0 %v779
        %1063 = vmatprep.subr.mxu0 %v787
        %1064 = vmatpush1.msra.mxu0 %v786
        %1065 = vmatprep.subr.mxu0 %v794
        %1066 = vmatpush1.msra.mxu0 %v793
        %1067 = vmatprep.subr.mxu0 %v801
        %1068 = vmatpush1.msra.mxu0 %v800
        %1069 = vmatprep.subr.mxu0 %v808
        %1070 = vmatpush1.msra.mxu0 %v807
        %1071 = vmatprep.subr.mxu0 %v815
        %1072 = vmatpush1.msra.mxu0 %v814
        %1073 = vmatprep.subr.mxu0 %v822
        %1074 = vmatpush1.msra.mxu0 %v821
        %1075 = vmatprep.subr.mxu0 %v829
        %1076 = vmatpush1.msra.mxu0 %v828
        %1077 = vmatprep.subr.mxu0 %v836
        %1078 = vmatpush1.msra.mxu0 %v835
        %1079 = vmatprep.subr.mxu0 %v843
        %1080 = vmatpush1.msra.mxu0 %v842
        %1081 = vmatprep.subr.mxu0 %v850
        %1082 = vmatpush1.msra.mxu0 %v849
        %1083 = vmatprep.subr.mxu0 %v857
        %1084 = vmatpush1.msra.mxu0 %v856
        %1085 = vmatprep.subr.mxu0 %v864
        %1086 = vmatpush1.msra.mxu0 %v863
        %1087 = vmatprep.subr.mxu0 %v871
        %1088 = vmatpush1.msra.mxu0 %v870
        %1089 = vmatprep.subr.mxu0 %v878
        %1090 = vmatpush1.msra.mxu0 %v877
        %1091 = vmatprep.subr.mxu0 0.0
        %1092 = vmatpush1.msra.mxu0 0.0
        %1093 = vmatprep.subr.mxu0 0.0
        %1094 = vmatpush1.msra.mxu0 0.0
        %1095 = vmatprep.subr.mxu0 0.0
        %1096 = vmatpush1.msra.mxu0 0.0
        %1097 = vmatprep.subr.mxu0 0.0
        %1098 = vmatpush1.msra.mxu0 0.0
        %1099 = vmatprep.subr.mxu0 0.0
        %1100 = vmatpush1.msra.mxu0 0.0
        %1101 = vmatprep.subr.mxu0 0.0
        %1102 = vmatpush1.msra.mxu0 0.0
        %1103 = vmatprep.subr.mxu0 0.0
        %1104 = vmatpush1.msra.mxu0 0.0
        %1105 = vmatprep.subr.mxu0 0.0
        %1106 = vmatpush1.msra.mxu0 0.0
        %1107 = vmatprep.subr.mxu0 0.0
        %1108 = vmatpush1.msra.mxu0 0.0
        %1109 = vmatprep.subr.mxu0 0.0
        %1110 = vmatpush1.msra.mxu0 0.0
        %1111 = vmatprep.subr.mxu0 0.0
        %1112 = vmatpush1.msra.mxu0 0.0
        %1113 = vmatprep.subr.mxu0 0.0
        %1114 = vmatpush1.msra.mxu0 0.0
        %1115 = vmatprep.subr.mxu0 0.0
        %1116 = vmatpush1.msra.mxu0 0.0
        %1117 = vmatprep.subr.mxu0 0.0
        %1118 = vmatpush1.msra.mxu0 0.0
        %1119 = vmatprep.subr.mxu0 0.0
        %1120 = vmatpush1.msra.mxu0 0.0
        %1121 = vmatprep.subr.mxu0 0.0
        %1122 = vmatpush1.msra.mxu0 0.0
        %1123 = vmatprep.mubr.f32.mxu0 0.0
        %1124 = vmatmul.mubr.f32.gmra.mrb[0].mxu0 %v767
        %v1125 = vpop.f32.mrb[0].mxu0
        %v1126 = vadd.f32 %v901, %v1125
        %v1127 = vpop.f32.mrb[0].mxu0
        %v1128 = vadd.f32 %v905, %v1127
        %1129 = vdwg.mxu0
        %1130 = vmatprep.subr.mxu0 0.0
        %1131 = vmatpush1.msra.mxu0 %v774
        %1132 = vmatprep.subr.mxu0 0.0
        %1133 = vmatpush1.msra.mxu0 %v781
        %1134 = vmatprep.subr.mxu0 0.0
        %1135 = vmatpush1.msra.mxu0 %v788
        %1136 = vmatprep.subr.mxu0 0.0
        %1137 = vmatpush1.msra.mxu0 %v795
        %1138 = vmatprep.subr.mxu0 0.0
        %1139 = vmatpush1.msra.mxu0 %v802
        %1140 = vmatprep.subr.mxu0 0.0
        %1141 = vmatpush1.msra.mxu0 %v809
        %1142 = vmatprep.subr.mxu0 0.0
        %1143 = vmatpush1.msra.mxu0 %v816
        %1144 = vmatprep.subr.mxu0 0.0
        %1145 = vmatpush1.msra.mxu0 %v823
        %1146 = vmatprep.subr.mxu0 0.0
        %1147 = vmatpush1.msra.mxu0 %v830
        %1148 = vmatprep.subr.mxu0 0.0
        %1149 = vmatpush1.msra.mxu0 %v837
        %1150 = vmatprep.subr.mxu0 0.0
        %1151 = vmatpush1.msra.mxu0 %v844
        %1152 = vmatprep.subr.mxu0 0.0
        %1153 = vmatpush1.msra.mxu0 %v851
        %1154 = vmatprep.subr.mxu0 0.0
        %1155 = vmatpush1.msra.mxu0 %v858
        %1156 = vmatprep.subr.mxu0 0.0
        %1157 = vmatpush1.msra.mxu0 %v865
        %1158 = vmatprep.subr.mxu0 0.0
        %1159 = vmatpush1.msra.mxu0 %v872
        %1160 = vmatprep.subr.mxu0 0.0
        %1161 = vmatpush1.msra.mxu0 %v879
        %1162 = vmatprep.subr.mxu0 0.0
        %1163 = vmatpush1.msra.mxu0 0.0
        %1164 = vmatprep.subr.mxu0 0.0
        %1165 = vmatpush1.msra.mxu0 0.0
        %1166 = vmatprep.subr.mxu0 0.0
        %1167 = vmatpush1.msra.mxu0 0.0
        %1168 = vmatprep.subr.mxu0 0.0
        %1169 = vmatpush1.msra.mxu0 0.0
        %1170 = vmatprep.subr.mxu0 0.0
        %1171 = vmatpush1.msra.mxu0 0.0
        %1172 = vmatprep.subr.mxu0 0.0
        %1173 = vmatpush1.msra.mxu0 0.0
        %1174 = vmatprep.subr.mxu0 0.0
        %1175 = vmatpush1.msra.mxu0 0.0
        %1176 = vmatprep.subr.mxu0 0.0
        %1177 = vmatpush1.msra.mxu0 0.0
        %1178 = vmatprep.subr.mxu0 0.0
        %1179 = vmatpush1.msra.mxu0 0.0
        %1180 = vmatprep.subr.mxu0 0.0
        %1181 = vmatpush1.msra.mxu0 0.0
        %1182 = vmatprep.subr.mxu0 0.0
        %1183 = vmatpush1.msra.mxu0 0.0
        %1184 = vmatprep.subr.mxu0 0.0
        %1185 = vmatpush1.msra.mxu0 0.0
        %1186 = vmatprep.subr.mxu0 0.0
        %1187 = vmatpush1.msra.mxu0 0.0
        %1188 = vmatprep.subr.mxu0 0.0
        %1189 = vmatpush1.msra.mxu0 0.0
        %1190 = vmatprep.subr.mxu0 0.0
        %1191 = vmatpush1.msra.mxu0 0.0
        %1192 = vmatprep.subr.mxu0 0.0
        %1193 = vmatpush1.msra.mxu0 0.0
        %1194 = vmatprep.mubr.f32.mxu0 0.0
        %1195 = vmatmul.mubr.f32.gmra.mrb[0].mxu0 %v767
        %v1196 = vpop.f32.mrb[0].mxu0
        %v1197 = vadd.f32 %v909, %v1196
        %v1198 = vpop.f32.mrb[0].mxu0
        %1199 = vdwg.mxu0
        %v1200 = vxor.u32 %v984, 2147483648
        %v1201 = vxor.u32 %v986, 2147483648
        %v1202 = vxor.u32 %v1055, 2147483648
        %v1203 = vxor.u32 %v1057, 2147483648
        %v1204 = vxor.u32 %v1126, 2147483648
        %v1205 = vxor.u32 %v1128, 2147483648
        %v1206 = vxor.u32 %v1197, 2147483648
        %v1207 = vmul.f32 %v1200, 1.442695
        %v1208 = vpow.pop %v1207
        %v1209 = vmul.f32 %v1201, 1.442695
        %v1210 = vpow.pop %v1209
        %v1211 = vmul.f32 %v1202, 1.442695
        %v1212 = vpow.pop %v1211
        %v1213 = vmul.f32 %v1203, 1.442695
        %v1214 = vpow.pop %v1213
        %v1215 = vmul.f32 %v1204, 1.442695
        %v1216 = vpow.pop %v1215
        %v1217 = vmul.f32 %v1205, 1.442695
        %v1218 = vpow.pop %v1217
        %v1219 = vmul.f32 %v1206, 1.442695
        %v1220 = vpow.pop %v1219
        %v1221 = vadd.f32 %v1208, 1.0
        %v1222 = vadd.f32 %v1210, 1.0
        %v1223 = vadd.f32 %v1212, 1.0
        %v1224 = vadd.f32 %v1214, 1.0
        %v1225 = vadd.f32 %v1216, 1.0
        %v1226 = vadd.f32 %v1218, 1.0
        %v1227 = vadd.f32 %v1220, 1.0
        %v1228 = vrcp.pop %v1221
        %v1229 = vmul.f32 1.0, %v1228
        %v1230 = vrcp.pop %v1222
        %v1231 = vmul.f32 1.0, %v1230
        %v1232 = vrcp.pop %v1223
        %v1233 = vmul.f32 1.0, %v1232
        %v1234 = vrcp.pop %v1224
        %v1235 = vmul.f32 1.0, %v1234
        %v1236 = vrcp.pop %v1225
        %v1237 = vmul.f32 1.0, %v1236
        %v1238 = vrcp.pop %v1226
        %v1239 = vmul.f32 1.0, %v1238
        %v1240 = vrcp.pop %v1227
        %v1241 = vmul.f32 1.0, %v1240
        %1242 = vst [vmem:[%s271] sm:$0xff] %v1229
        %1243 = vst [vmem:[%s271 + $0x8] sm:$0xff] %v1231
        %1244 = vst [vmem:[%s271 + $0x10] sm:$0xff] %v1233
        %1245 = vst [vmem:[%s271 + $0x18] sm:$0xff] %v1235
        %1246 = vst [vmem:[%s271 + $0x20] sm:$0xff] %v1237
        %1247 = vst [vmem:[%s271 + $0x28] sm:$0xff] %v1239
        %1248 = vst.msk [vmem:[%s271 + $0x30] sm:$0xff] %vm389, %v1241
        %s1249 = sand.u32 %s181, 1
        %s1250 = scalar_lea.sflag [#allocation3], %s1249
        %s1251 = sand.u32 %s181, 1
        %s1252 = smul.addr %s1251, 56
        %s1253 = scalar_lea.vmem [#allocation2], %s1252
        // Predicated region
        $region49: #{ae_forward.1} parent=47 // pred_check
          %p1254 = pneg %p191
        $region50: #{ae_forward.1} parent=47 // pred_check_branch
          %1256 = sbr.rel (%p1254) target = $region52
        $region51: #{ae_forward.1} parent=47 // pred_region
          %s1258 = ssub.s32 896, 896
          %1259 = vsyncadd %s1250, %s1258
          %s1260 = smul.addr %s21, 7
          %s1261 = smul.addr %s1260, 128
          %s1262 = scalar_lea.hbm %s7, %s1261
          %s1264 = sshll.u32 %s1253, 4
          %s1265 = int_to_ptr.vmem [resolvable:$true] %s1264
          %1267 = dma.vmem_to_hbm [thread:$0]  %s1265, 896, %s1262, %s1250
        $region52: #{ae_forward.1} parent=47 // pred_fallthru
          _
      $region48: #{ae_forward.1} parent=5 // pred_fallthru
        _
      %p1268 = scmp.le.s32.totalorder 2, %s16
      // Predicated region
      $region53: #{ae_forward.1} parent=5 // pred_check
        %p1269 = pneg %p1268
      $region54: #{ae_forward.1} parent=5 // pred_check_branch
        %1271 = sbr.rel (%p1269) target = $region56
      $region55: #{ae_forward.1} parent=5 // pred_region
        %s1272 = ssub.s32 %s16, 2
        // Predicated region
        $region57: #{ae_forward.1} parent=55 // pred_check
          %p1273 = pneg %p197
        $region58: #{ae_forward.1} parent=55 // pred_check_branch
          %1275 = sbr.rel (%p1273) target = $region60
        $region59: #{ae_forward.1} parent=55 // pred_region
          %s1276 = sand.u32 %s182, 1
          %s1277 = scalar_lea.sflag [#allocation3], %s1276
          %s1278 = sand.u32 %s182, 1
          %s1279 = smul.addr %s1278, 56
          %s1280 = scalar_lea.vmem [#allocation2], %s1279
          %1281 = dma.done %s1277, 896
        $region60: #{ae_forward.1} parent=55 // pred_fallthru
          _
      $region56: #{ae_forward.1} parent=5 // pred_fallthru
        _
    $region6: #{ae_forward.1} parent=1 // loop_footer
      %s20 = sadd.s32 1, %s16
    $region7: #{ae_forward.1} parent=1 // loop_footer_branch
      %15 = sbr.rel target = $region3
    $region8: #{ae_forward.1} parent=1 // loop_exit
      _
    %1282 = vsyncpa [#allocation3], 1
    %s1283 = scalar_lea.sflag [#allocation3], 1
    %1284 = vsyncpa %s1283, 1

</llo_original>
